<compile_context>
chip_gen: v7x
topology: tpu7x:2x2x1
jax: 0.10.0
libtpu: 0.0.40
codegen_flags: <defaults>
</compile_context>

<pallas_src>
import functools

import jax
import jax.numpy as jnp
from jax import lax
from jax.experimental import pallas as pl
from jax.experimental.pallas import tpu as pltpu


def _round_up(a, b):
    return ((a + b - 1) // b) * b


# --------------------------------------------------------------------------
# Fused KAN (base path) + LayerNorm, lane-dense packed layout.
# TODO(synk): the repo's KAN layer also carries learnable spline bases; the KAN
# source was not provided, so only the linear + SiLU base transform is kernelized.
# --------------------------------------------------------------------------
def _kan_ln_kernel(*refs, n_layers):
    x_ref = refs[0]
    o_ref = refs[-1]
    wb = refs[1:1 + 2 * n_layers]
    a_ref = refs[1 + 2 * n_layers]       # (P*D, P*D) block-diag group-average matrix
    g_ref = refs[2 + 2 * n_layers]       # (1, P*D) gamma tiled per packed point
    beta_ref = refs[3 + 2 * n_layers]    # (1, P*D) beta tiled per packed point

    h = x_ref[...].astype(jnp.float32)   # (tile/P, P*d_in) packed points
    for i in range(n_layers):
        w = wb[2 * i][...]               # kron(I_P, W_i)
        b = wb[2 * i + 1][...]           # bias tiled P times
        h = jnp.dot(h, w, preferred_element_type=jnp.float32) + b
        if i < n_layers - 1:
            h = h * jax.nn.sigmoid(h)    # SiLU between layers

    # Per-point LayerNorm (each group of D lanes = one point's channels), eps=1e-5.
    # Group mean / var via MXU matmuls with the averaging matrix -> stays lane-dense.
    mean = jnp.dot(h, a_ref[...], preferred_element_type=jnp.float32)
    cen = h - mean
    var = jnp.dot(cen * cen, a_ref[...], preferred_element_type=jnp.float32)
    inv = lax.rsqrt(var + 1e-5)
    o_ref[...] = (cen * inv * g_ref[...] + beta_ref[...]).astype(o_ref.dtype)


def fused_kan_layernorm(x, kan_params, gamma, beta, *, tile_n=1024):
    """Returns the PADDED (n_pad, d_out) activations (pad rows are junk; callers
    must mask them, see global_sa_module)."""
    n, d_in = x.shape
    n_layers = len(kan_params)
    d_out = kan_params[-1][0].shape[1]

    # Pack P points per row so the output last dim is 128 lanes (dense stores).
    pack = 128 // d_out if (d_out <= 128 and 128 % d_out == 0) else 1
    align = 8 * pack                          # packed sublane dim must stay /8
    tile = min(_round_up(tile_n, align), _round_up(max(n, 1), align))
    n_pad = _round_up(n, tile)
    if n_pad != n:
        x = jnp.pad(x, ((0, n_pad - n), (0, 0)))
    xp = x.reshape(n_pad // pack, pack * d_in)        # free row-major reshape

    eye = jnp.eye(pack, dtype=jnp.float32)
    flat = []
    for w, b in kan_params:
        flat.append(jnp.kron(eye, w.astype(jnp.float32)))      # block-diagonal
        flat.append(jnp.tile(b.astype(jnp.float32), (1, pack)))
    a_mat = jnp.kron(eye, jnp.full((d_out, d_out), 1.0 / d_out, jnp.float32))
    g_t = jnp.tile(gamma.astype(jnp.float32), (1, pack))
    b_t = jnp.tile(beta.astype(jnp.float32), (1, pack))

    in_specs = [pl.BlockSpec((tile // pack, pack * d_in), lambda i: (i, 0))]
    for arr in flat + [a_mat, g_t, b_t]:
        in_specs.append(pl.BlockSpec(arr.shape, lambda i: (0, 0)))

    out = pl.pallas_call(
        functools.partial(_kan_ln_kernel, n_layers=n_layers),
        out_shape=jax.ShapeDtypeStruct((n_pad // pack, pack * d_out), x.dtype),
        grid=(n_pad // tile,),
        in_specs=in_specs,
        out_specs=pl.BlockSpec((tile // pack, pack * d_out), lambda i: (i, 0)),
        compiler_params=pltpu.CompilerParams(dimension_semantics=("parallel",)),
    )(xp, *flat, a_mat, g_t, b_t)
    return out.reshape(n_pad, d_out)                  # free row-major reshape


# --------------------------------------------------------------------------
# Set2Set(in_channels=H, processing_steps=8) global pooling.
# x stays VMEM-resident; batch ids are raw int32, turned into an ADDITIVE mask
# bias once. Because the 1-layer LSTM hidden state equals the previous q, the
# gate computation needs only two tiny matmuls per step and no lane concats.
# --------------------------------------------------------------------------
def _set2set_kernel(x_ref, bid_ref, wqh_ref, wr_ref, b_ref, o_ref,
                    *, steps, num_graphs):
    x = x_ref[...].astype(jnp.float32)                      # (N, H)
    n, h_dim = x.shape

    # Hoisted out of the step loop: one transpose, one mask-bias build.
    xT = jnp.transpose(x)                                   # (H, N)
    seg_iota = lax.broadcasted_iota(jnp.int32, (num_graphs, n), 0)
    mask_bias = jnp.where(bid_ref[...] == seg_iota, 0.0, -1e30).astype(jnp.float32)

    w_qh = wqh_ref[...]                                     # (H, 4H) = W_ih[:H] + W_hh
    w_r = wr_ref[...]                                       # (H, 4H) = W_ih[H:]
    bias = b_ref[...]                                       # (1, 4H) = b_ih + b_hh

    def step(_, carry):
        q, r, c = carry                                     # h_lstm == q (1-layer LSTM)
        gates = (jnp.dot(q, w_qh, preferred_element_type=jnp.float32)
                 + jnp.dot(r, w_r, preferred_element_type=jnp.float32)
                 + bias)                                    # (B, 4H)
        i_g = jax.nn.sigmoid(gates[:, 0 * h_dim:1 * h_dim])
        f_g = jax.nn.sigmoid(gates[:, 1 * h_dim:2 * h_dim])
        g_g = jnp.tanh(gates[:, 2 * h_dim:3 * h_dim])
        o_g = jax.nn.sigmoid(gates[:, 3 * h_dim:4 * h_dim])
        c_new = f_g * c + i_g * g_g
        q_new = o_g * jnp.tanh(c_new)                       # (B, H)

        # Masked segment softmax over points of each graph (additive bias form).
        e = jnp.dot(q_new, xT, preferred_element_type=jnp.float32) + mask_bias
        seg_max = jnp.max(e, axis=1, keepdims=True)         # (B, 1)
        p = jnp.exp(e - seg_max)                            # masked lanes -> exp(-1e30)=0
        denom = jnp.sum(p, axis=1, keepdims=True) + 1e-16   # PyG softmax epsilon
        a = p * pl.reciprocal(denom, approx=True)
        r_new = jnp.dot(a, x, preferred_element_type=jnp.float32)   # (B, H) seg sum
        return q_new, r_new, c_new

    z = jnp.zeros((num_graphs, h_dim), jnp.float32)
    q, r, _ = lax.fori_loop(0, steps, step, (z, z, z), unroll=True)
    o_ref[...] = jnp.concatenate([q, r], axis=-1).astype(o_ref.dtype)   # q_star once


def set2set(x, batch_ids, w_qh, w_r, b_lstm, num_graphs, *, steps=8):
    n, h_dim = x.shape
    bid = batch_ids.reshape(1, n).astype(jnp.int32)

    # Raise the scoped-VMEM ceiling to cover the resident x (v5e default is 16 MiB,
    # v6e 32 MiB).  TODO(synk): single-buffer the x block / stream N-tiles for v7x.
    vmem_need = 2 * n * h_dim * 4 + 6 * num_graphs * n * 4 + (8 << 20)
    vmem_limit = int(min(128 << 20, max(32 << 20, vmem_need)))

    return pl.pallas_call(
        functools.partial(_set2set_kernel, steps=steps, num_graphs=num_graphs),
        out_shape=jax.ShapeDtypeStruct((num_graphs, 2 * h_dim), x.dtype),
        grid=(1,),
        in_specs=[
            pl.BlockSpec((n, h_dim), lambda i: (0, 0)),
            pl.BlockSpec((1, n), lambda i: (0, 0)),
            pl.BlockSpec((h_dim, 4 * h_dim), lambda i: (0, 0)),
            pl.BlockSpec((h_dim, 4 * h_dim), lambda i: (0, 0)),
            pl.BlockSpec((1, 4 * h_dim), lambda i: (0, 0)),
        ],
        out_specs=pl.BlockSpec((num_graphs, 2 * h_dim), lambda i: (0, 0)),
        compiler_params=pltpu.CompilerParams(vmem_limit_bytes=vmem_limit),
    )(x, bid, w_qh, w_r, b_lstm)


# --------------------------------------------------------------------------
# Parameters + module-level forward (glue in plain JAX).
# --------------------------------------------------------------------------
def init_params(key, nn_dims):
    keys = jax.random.split(key, len(nn_dims) + 2)
    kan = []
    for idx, (d_in, d_out) in enumerate(zip(nn_dims[:-1], nn_dims[1:])):
        w = jax.random.normal(keys[idx], (d_in, d_out), jnp.float32) / jnp.sqrt(d_in)
        b = jnp.zeros((1, d_out), jnp.float32)
        kan.append((w, b))
    h = nn_dims[-1]
    gamma = jnp.ones((1, h), jnp.float32)
    beta = jnp.zeros((1, h), jnp.float32)
    w_ih = jax.random.normal(keys[-2], (2 * h, 4 * h), jnp.float32) / jnp.sqrt(2 * h)
    w_hh = jax.random.normal(keys[-1], (h, 4 * h), jnp.float32) / jnp.sqrt(h)
    b_lstm = jnp.zeros((1, 4 * h), jnp.float32)
    # Since the LSTM hidden state h equals the previous q in Set2Set, fold W_hh
    # into the q-rows of W_ih: gates = q @ (W_ih_q + W_hh) + r @ W_ih_r + b.
    w_qh = w_ih[:h] + w_hh
    w_r = w_ih[h:]
    return dict(kan=kan, gamma=gamma, beta=beta, w_qh=w_qh, w_r=w_r, b_lstm=b_lstm)


def global_sa_module(x, pos, batch, reflectance, params, num_graphs):
    h_pad = fused_kan_layernorm(x, params["kan"], params["gamma"], params["beta"])

    # Keep padding end-to-end: pad batch ids with sentinel == num_graphs so the
    # in-kernel mask excludes the padded rows (no out[:n] HBM copy).
    n, n_pad = x.shape[0], h_pad.shape[0]
    batch_ids = batch.astype(jnp.int32)
    if n_pad != n:
        batch_ids = jnp.pad(batch_ids, (0, n_pad - n), constant_values=num_graphs)

    x_out = set2set(h_pad, batch_ids, params["w_qh"], params["w_r"],
                    params["b_lstm"], num_graphs, steps=8)

    size = 2 * h_pad.shape[1]                   # self.size = NN[-1] * 2
    pos_out = jnp.zeros((size, 3), pos.dtype)
    batch_out = jnp.arange(size, dtype=batch.dtype)
    refl_out = jnp.zeros((size,), reflectance.dtype)
    return x_out, pos_out, batch_out, refl_out


if __name__ == "__main__":
    key = jax.random.PRNGKey(0)
    k_x, k_pos, k_refl, k_param = jax.random.split(key, 4)

    N = 256                  # number of points
    NN = [8, 32, 32]         # KAN layer sizes -> in_channels=8, hidden=32
    num_graphs = 2           # two point clouds in the mini-batch

    x = jax.random.normal(k_x, (N, NN[0]), jnp.float32)
    pos = jax.random.normal(k_pos, (N, 3), jnp.float32)
    batch = jnp.repeat(jnp.arange(num_graphs, dtype=jnp.int32), N // num_graphs)
    reflectance = jax.random.uniform(k_refl, (N,), jnp.float32)

    params = init_params(k_param, NN)

    outs = global_sa_module(x, pos, batch, reflectance, params, num_graphs)
    jax.block_until_ready(outs)
    x_out, pos_out, batch_out, refl_out = outs
    assert x_out.shape == (num_graphs, 2 * NN[-1])
    assert pos_out.shape == (2 * NN[-1], 3)
    assert batch_out.shape == (2 * NN[-1],)
    assert refl_out.shape == (2 * NN[-1],)
    assert bool(jnp.all(jnp.isfinite(x_out)))
    print("KERNEL_OK")
</pallas_src>

<mosaic_0001>
module attributes {stable_mosaic.version = 11 : i64} {
  func.func @_kan_ln_kernel(%arg0: i32, %arg1: memref<64x32xf32, #tpu.memory_space<vmem>>, %arg2: memref<32x128xf32, #tpu.memory_space<vmem>>, %arg3: memref<1x128xf32, #tpu.memory_space<vmem>>, %arg4: memref<128x128xf32, #tpu.memory_space<vmem>>, %arg5: memref<1x128xf32, #tpu.memory_space<vmem>>, %arg6: memref<128x128xf32, #tpu.memory_space<vmem>>, %arg7: memref<1x128xf32, #tpu.memory_space<vmem>>, %arg8: memref<1x128xf32, #tpu.memory_space<vmem>>, %arg9: memref<64x128xf32, #tpu.memory_space<vmem>>) attributes {dimension_semantics = [#tpu.dimension_semantics<parallel>], iteration_bounds = array<i64: 1>, scalar_prefetch = 0 : i64, scratch_operands = 0 : i64, tpu.core_type = #tpu.core_type<tc>, window_params = [{transform_indices = @transform_0, window_bounds = array<i64: 64, 32>}, {pipeline_mode = #tpu.pipeline_mode<synchronous>, transform_indices = @transform_1, window_bounds = array<i64: 32, 128>}, {pipeline_mode = #tpu.pipeline_mode<synchronous>, transform_indices = @transform_2, window_bounds = array<i64: 1, 128>}, {pipeline_mode = #tpu.pipeline_mode<synchronous>, transform_indices = @transform_3, window_bounds = array<i64: 128, 128>}, {pipeline_mode = #tpu.pipeline_mode<synchronous>, transform_indices = @transform_4, window_bounds = array<i64: 1, 128>}, {pipeline_mode = #tpu.pipeline_mode<synchronous>, transform_indices = @transform_5, window_bounds = array<i64: 128, 128>}, {pipeline_mode = #tpu.pipeline_mode<synchronous>, transform_indices = @transform_6, window_bounds = array<i64: 1, 128>}, {pipeline_mode = #tpu.pipeline_mode<synchronous>, transform_indices = @transform_7, window_bounds = array<i64: 1, 128>}, {transform_indices = @transform_8, window_bounds = array<i64: 64, 128>}]} {
    %c0 = arith.constant 0 : index
    %c0_0 = arith.constant 0 : index
    %0 = vector.load %arg1[%c0, %c0_0] : memref<64x32xf32, #tpu.memory_space<vmem>>, vector<64x32xf32>
    %c0_1 = arith.constant 0 : index
    %c0_2 = arith.constant 0 : index
    %1 = vector.load %arg2[%c0_1, %c0_2] : memref<32x128xf32, #tpu.memory_space<vmem>>, vector<32x128xf32>
    %c0_3 = arith.constant 0 : index
    %c0_4 = arith.constant 0 : index
    %2 = vector.load %arg3[%c0_3, %c0_4] : memref<1x128xf32, #tpu.memory_space<vmem>>, vector<1x128xf32>
    %cst = arith.constant dense<0.000000e+00> : vector<64x128xf32>
    %3 = tpu.matmul %0, %1, %cst {dimension_numbers = #tpu.dot_dimension_numbers<[1], [0], [0], [1], [0, 0, 1, 1], [], []>} : vector<64x32xf32>, vector<32x128xf32>, vector<64x128xf32> -> vector<64x128xf32>
    %4 = vector.broadcast %2 : vector<1x128xf32> to vector<64x128xf32>
    %5 = arith.addf %3, %4 : vector<64x128xf32>
    %6 = arith.negf %5 : vector<64x128xf32>
    %7 = math.exp %6 : vector<64x128xf32>
    %cst_5 = arith.constant 1.000000e+00 : f32
    %8 = vector.broadcast %cst_5 : f32 to vector<64x128xf32>
    %9 = arith.addf %8, %7 : vector<64x128xf32>
    %10 = arith.divf %8, %9 : vector<64x128xf32>
    %11 = arith.mulf %5, %10 : vector<64x128xf32>
    %c0_6 = arith.constant 0 : index
    %c0_7 = arith.constant 0 : index
    %12 = vector.load %arg4[%c0_6, %c0_7] : memref<128x128xf32, #tpu.memory_space<vmem>>, vector<128x128xf32>
    %c0_8 = arith.constant 0 : index
    %c0_9 = arith.constant 0 : index
    %13 = vector.load %arg5[%c0_8, %c0_9] : memref<1x128xf32, #tpu.memory_space<vmem>>, vector<1x128xf32>
    %cst_10 = arith.constant dense<0.000000e+00> : vector<64x128xf32>
    %14 = tpu.matmul %11, %12, %cst_10 {dimension_numbers = #tpu.dot_dimension_numbers<[1], [0], [0], [1], [0, 0, 1, 1], [], []>} : vector<64x128xf32>, vector<128x128xf32>, vector<64x128xf32> -> vector<64x128xf32>
    %15 = vector.broadcast %13 : vector<1x128xf32> to vector<64x128xf32>
    %16 = arith.addf %14, %15 : vector<64x128xf32>
    %c0_11 = arith.constant 0 : index
    %c0_12 = arith.constant 0 : index
    %17 = vector.load %arg6[%c0_11, %c0_12] : memref<128x128xf32, #tpu.memory_space<vmem>>, vector<128x128xf32>
    %cst_13 = arith.constant dense<0.000000e+00> : vector<64x128xf32>
    %18 = tpu.matmul %16, %17, %cst_13 {dimension_numbers = #tpu.dot_dimension_numbers<[1], [0], [0], [1], [0, 0, 1, 1], [], []>} : vector<64x128xf32>, vector<128x128xf32>, vector<64x128xf32> -> vector<64x128xf32>
    %19 = arith.subf %16, %18 : vector<64x128xf32>
    %20 = arith.mulf %19, %19 : vector<64x128xf32>
    %c0_14 = arith.constant 0 : index
    %c0_15 = arith.constant 0 : index
    %21 = vector.load %arg6[%c0_14, %c0_15] : memref<128x128xf32, #tpu.memory_space<vmem>>, vector<128x128xf32>
    %cst_16 = arith.constant dense<0.000000e+00> : vector<64x128xf32>
    %22 = tpu.matmul %20, %21, %cst_16 {dimension_numbers = #tpu.dot_dimension_numbers<[1], [0], [0], [1], [0, 0, 1, 1], [], []>} : vector<64x128xf32>, vector<128x128xf32>, vector<64x128xf32> -> vector<64x128xf32>
    %cst_17 = arith.constant 9.99999974E-6 : f32
    %23 = vector.broadcast %cst_17 : f32 to vector<64x128xf32>
    %24 = arith.addf %22, %23 : vector<64x128xf32>
    %25 = math.rsqrt %24 : vector<64x128xf32>
    %26 = arith.mulf %19, %25 : vector<64x128xf32>
    %c0_18 = arith.constant 0 : index
    %c0_19 = arith.constant 0 : index
    %27 = vector.load %arg7[%c0_18, %c0_19] : memref<1x128xf32, #tpu.memory_space<vmem>>, vector<1x128xf32>
    %28 = vector.broadcast %27 : vector<1x128xf32> to vector<64x128xf32>
    %29 = arith.mulf %26, %28 : vector<64x128xf32>
    %c0_20 = arith.constant 0 : index
    %c0_21 = arith.constant 0 : index
    %30 = vector.load %arg8[%c0_20, %c0_21] : memref<1x128xf32, #tpu.memory_space<vmem>>, vector<1x128xf32>
    %31 = vector.broadcast %30 : vector<1x128xf32> to vector<64x128xf32>
    %32 = arith.addf %29, %31 : vector<64x128xf32>
    %c0_22 = arith.constant 0 : index
    %c0_23 = arith.constant 0 : index
    %33 = vector.load %arg9[%c0_22, %c0_23] : memref<64x128xf32, #tpu.memory_space<vmem>>, vector<64x128xf32>
    tpu.vector_store %arg9[%c0_22, %c0_23], %32 {strides = array<i32>} : memref<64x128xf32, #tpu.memory_space<vmem>>, vector<64x128xf32>,
    return
  }
  func.func @transform_0(%arg0: i32) -> (i32, i32) {
    %c0_i32 = arith.constant 0 : i32
    %c0_i32_0 = arith.constant 0 : i32
    return %arg0, %c0_i32 : i32, i32
  }
  func.func @transform_1(%arg0: i32) -> (i32, i32) {
    %c0_i32 = arith.constant 0 : i32
    %c0_i32_0 = arith.constant 0 : i32
    %c0_i32_1 = arith.constant 0 : i32
    return %c0_i32, %c0_i32_0 : i32, i32
  }
  func.func @transform_2(%arg0: i32) -> (i32, i32) {
    %c0_i32 = arith.constant 0 : i32
    %c0_i32_0 = arith.constant 0 : i32
    %c0_i32_1 = arith.constant 0 : i32
    return %c0_i32, %c0_i32_0 : i32, i32
  }
  func.func @transform_3(%arg0: i32) -> (i32, i32) {
    %c0_i32 = arith.constant 0 : i32
    %c0_i32_0 = arith.constant 0 : i32
    %c0_i32_1 = arith.constant 0 : i32
    return %c0_i32, %c0_i32_0 : i32, i32
  }
  func.func @transform_4(%arg0: i32) -> (i32, i32) {
    %c0_i32 = arith.constant 0 : i32
    %c0_i32_0 = arith.constant 0 : i32
    %c0_i32_1 = arith.constant 0 : i32
    return %c0_i32, %c0_i32_0 : i32, i32
  }
  func.func @transform_5(%arg0: i32) -> (i32, i32) {
    %c0_i32 = arith.constant 0 : i32
    %c0_i32_0 = arith.constant 0 : i32
    %c0_i32_1 = arith.constant 0 : i32
    return %c0_i32, %c0_i32_0 : i32, i32
  }
  func.func @transform_6(%arg0: i32) -> (i32, i32) {
    %c0_i32 = arith.constant 0 : i32
    %c0_i32_0 = arith.constant 0 : i32
    %c0_i32_1 = arith.constant 0 : i32
    return %c0_i32, %c0_i32_0 : i32, i32
  }
  func.func @transform_7(%arg0: i32) -> (i32, i32) {
    %c0_i32 = arith.constant 0 : i32
    %c0_i32_0 = arith.constant 0 : i32
    %c0_i32_1 = arith.constant 0 : i32
    return %c0_i32, %c0_i32_0 : i32, i32
  }
  func.func @transform_8(%arg0: i32) -> (i32, i32) {
    %c0_i32 = arith.constant 0 : i32
    %c0_i32_0 = arith.constant 0 : i32
    return %arg0, %c0_i32 : i32, i32
  }
}

</mosaic_0001>

<llo_original>
// kernel: tpu_custom_call.1
$region0: #{tpu_custom_call.1}
  #allocation0 [shape = 'u32[]', space=smem, size = 0x4, offset = 0x4, fixed_abs, tag = 'smem constant byte address 0x4 - core index']
  #allocation1 [shape = 'u32[144,128]{1,0:T(1,128)}', space=vmem, size = 0x12000, scoped, tag = 'internal scratch']
  %s0 = inlined_call_operand.vmem [shape: f32[64,32], index: 0, kind: input, shape index: {}]
  %s1 = inlined_call_operand.vmem [shape: f32[32,128], index: 1, kind: input, shape index: {}]
  %s2 = inlined_call_operand.vmem [shape: f32[1,128], index: 2, kind: input, shape index: {}]
  %s3 = inlined_call_operand.hbm [shape: f32[128,128], index: 3, kind: input, shape index: {}]
  %s4 = inlined_call_operand.vmem [shape: f32[1,128], index: 4, kind: input, shape index: {}]
  %s5 = inlined_call_operand.hbm [shape: f32[128,128], index: 5, kind: input, shape index: {}]
  %s6 = inlined_call_operand.vmem [shape: f32[1,128], index: 6, kind: input, shape index: {}]
  %s7 = inlined_call_operand.vmem [shape: f32[1,128], index: 7, kind: input, shape index: {}]
  %s8 = inlined_call_operand.hbm [shape: f32[64,128], index: 8, kind: output, shape index: {}]
  %s9 = sld [smem:[#allocation0]]
  $region50: #{tpu_custom_call.1} parent=0
    _
  %s11 = ssub.s32 1, %s9
  %s12 = scalar_select 0, %s11, %s9
  $region1: #{tpu_custom_call.1} parent=0
    #allocation2 [shape = 'u8[65536]{0}', space=vmem, size = 0x10000, scoped, tag = 'input window, operand 3, single buffered']
    #allocation3 [shape = 's32[1]{0}', space=sflag, size = 0x4, scoped, tag = 'scoped memory for tpu_custom_call.1']
    #allocation4 [shape = 's32[1]{0}', space=sflag, size = 0x4, scoped, tag = 'scoped memory for tpu_custom_call.1']
    #allocation5 [shape = 'u8[65536]{0}', space=vmem, size = 0x10000, scoped, tag = 'input window, operand 5, single buffered']
    #allocation6 [shape = 's32[1]{0}', space=sflag, size = 0x4, scoped, tag = 'scoped memory for tpu_custom_call.1']
    #allocation7 [shape = 'u8[32768]{0}', space=vmem, size = 0x8000, scoped, tag = 'output window, operand 0, single buffered']
    %13 = vsyncpa [#allocation3], 0
    %14 = vsyncpa [#allocation6], 0
    %15 = vsyncpa [#allocation4], 0
    // Predicated region
    $region2: #{tpu_custom_call.1} parent=1 // pred_check
      _
    $region3: #{tpu_custom_call.1} parent=1 // pred_check_branch
      %17 = sbr.rel (0) target = $region5
    $region4: #{tpu_custom_call.1} parent=1 // pred_region
      _
    $region5: #{tpu_custom_call.1} parent=1 // pred_fallthru
      _
    // Predicated region
    $region6: #{tpu_custom_call.1} parent=1 // pred_check
      _
    $region7: #{tpu_custom_call.1} parent=1 // pred_check_branch
      %19 = sbr.rel (0) target = $region9
    $region8: #{tpu_custom_call.1} parent=1 // pred_region
      _
    $region9: #{tpu_custom_call.1} parent=1 // pred_fallthru
      _
    // Predicated region
    $region10: #{tpu_custom_call.1} parent=1 // pred_check
      _
    $region11: #{tpu_custom_call.1} parent=1 // pred_check_branch
      %21 = sbr.rel (0) target = $region13
    $region12: #{tpu_custom_call.1} parent=1 // pred_region
      _
    $region13: #{tpu_custom_call.1} parent=1 // pred_fallthru
      _
    // Predicated region
    $region14: #{tpu_custom_call.1} parent=1 // pred_check
      _
    $region15: #{tpu_custom_call.1} parent=1 // pred_check_branch
      %23 = sbr.rel (0) target = $region17
    $region16: #{tpu_custom_call.1} parent=1 // pred_region
      %s25 = ssub.s32 2048, 2048
      %26 = vsyncadd [#allocation3], %s25
      %s27 = sshll.u32 [#allocation2], 4
      %s28 = int_to_ptr.vmem [resolvable:$true] %s27
      %33 = dma.hbm_to_vmem [thread:$0]  %s3, 2048, %s28, [#allocation3], 128, 128, 8
    $region17: #{tpu_custom_call.1} parent=1 // pred_fallthru
      _
    // Predicated region
    $region18: #{tpu_custom_call.1} parent=1 // pred_check
      _
    $region19: #{tpu_custom_call.1} parent=1 // pred_check_branch
      %35 = sbr.rel (0) target = $region21
    $region20: #{tpu_custom_call.1} parent=1 // pred_region
      _
    $region21: #{tpu_custom_call.1} parent=1 // pred_fallthru
      _
    // Predicated region
    $region22: #{tpu_custom_call.1} parent=1 // pred_check
      _
    $region23: #{tpu_custom_call.1} parent=1 // pred_check_branch
      %37 = sbr.rel (0) target = $region25
    $region24: #{tpu_custom_call.1} parent=1 // pred_region
      %s39 = ssub.s32 2048, 2048
      %40 = vsyncadd [#allocation6], %s39
      %s41 = sshll.u32 [#allocation5], 4
      %s42 = int_to_ptr.vmem [resolvable:$true] %s41
      %47 = dma.hbm_to_vmem [thread:$0]  %s5, 2048, %s42, [#allocation6], 128, 128, 8
    $region25: #{tpu_custom_call.1} parent=1 // pred_fallthru
      _
    // Predicated region
    $region26: #{tpu_custom_call.1} parent=1 // pred_check
      _
    $region27: #{tpu_custom_call.1} parent=1 // pred_check_branch
      %49 = sbr.rel (0) target = $region29
    $region28: #{tpu_custom_call.1} parent=1 // pred_region
      _
    $region29: #{tpu_custom_call.1} parent=1 // pred_fallthru
      _
    // Predicated region
    $region30: #{tpu_custom_call.1} parent=1 // pred_check
      _
    $region31: #{tpu_custom_call.1} parent=1 // pred_check_branch
      %51 = sbr.rel (0) target = $region33
    $region32: #{tpu_custom_call.1} parent=1 // pred_region
      _
    $region33: #{tpu_custom_call.1} parent=1 // pred_fallthru
      _
    // Predicated region
    $region34: #{tpu_custom_call.1} parent=1 // pred_check
      _
    $region35: #{tpu_custom_call.1} parent=1 // pred_check_branch
      %53 = sbr.rel (0) target = $region37
    $region36: #{tpu_custom_call.1} parent=1 // pred_region
      %54 = dma.done [#allocation3], 2048
    $region37: #{tpu_custom_call.1} parent=1 // pred_fallthru
      _
    // Predicated region
    $region38: #{tpu_custom_call.1} parent=1 // pred_check
      _
    $region39: #{tpu_custom_call.1} parent=1 // pred_check_branch
      %56 = sbr.rel (0) target = $region41
    $region40: #{tpu_custom_call.1} parent=1 // pred_region
      %57 = dma.done [#allocation6], 2048
    $region41: #{tpu_custom_call.1} parent=1 // pred_fallthru
      _
    %v58 = vld [vmem:[%s0] sm:$0xff]
    %v59 = vld [vmem:[%s0 + $0x8] sm:$0xff]
    %v60 = vld [vmem:[%s0 + $0x10] sm:$0xff]
    %v61 = vld [vmem:[%s0 + $0x18] sm:$0xff]
    %v62 = vld [vmem:[%s0 + $0x20] sm:$0xff]
    %v63 = vld [vmem:[%s0 + $0x28] sm:$0xff]
    %v64 = vld [vmem:[%s0 + $0x30] sm:$0xff]
    %v65 = vld [vmem:[%s0 + $0x38] sm:$0xff]
    %v66 = vld [vmem:[%s1] sm:$0xff]
    %v67 = vld [vmem:[%s1 + $0x8] sm:$0xff]
    %v68 = vld [vmem:[%s1 + $0x10] sm:$0xff]
    %v69 = vld [vmem:[%s1 + $0x18] sm:$0xff]
    %v70 = vld [vmem:[%s2] sm:$0x1]
    %v72 = vlaneseq
    %v73 = vshrl.u32 %v72, 7
    %v74 = vsub.s32 0, %v73
    %v75 = vrot.slane %v70, %v74
    %vm77 = vcmask 261120
    %v79 = vsel %vm77, %v58, 0
    %v82 = vsel %vm77, %v59, 0
    %v85 = vsel %vm77, %v60, 0
    %v88 = vsel %vm77, %v61, 0
    %v91 = vsel %vm77, %v62, 0
    %v94 = vsel %vm77, %v63, 0
    %v97 = vsel %vm77, %v64, 0
    %v100 = vsel %vm77, %v65, 0
    %102 = vmatprep.subr.mxu0 0.0
    %103 = vmatpush1.msra.mxu0 %v66
    %104 = vmatprep.subr.mxu0 0.0
    %105 = vmatpush1.msra.mxu0 %v67
    %106 = vmatprep.subr.mxu0 0.0
    %107 = vmatpush1.msra.mxu0 %v68
    %108 = vmatprep.subr.mxu0 0.0
    %109 = vmatpush1.msra.mxu0 %v69
    %110 = vmatprep.subr.mxu0 0.0
    %111 = vmatpush1.msra.mxu0 0.0
    %112 = vmatprep.subr.mxu0 0.0
    %113 = vmatpush1.msra.mxu0 0.0
    %114 = vmatprep.subr.mxu0 0.0
    %115 = vmatpush1.msra.mxu0 0.0
    %116 = vmatprep.subr.mxu0 0.0
    %117 = vmatpush1.msra.mxu0 0.0
    %118 = vmatprep.subr.mxu0 0.0
    %119 = vmatpush1.msra.mxu0 0.0
    %120 = vmatprep.subr.mxu0 0.0
    %121 = vmatpush1.msra.mxu0 0.0
    %122 = vmatprep.subr.mxu0 0.0
    %123 = vmatpush1.msra.mxu0 0.0
    %124 = vmatprep.subr.mxu0 0.0
    %125 = vmatpush1.msra.mxu0 0.0
    %126 = vmatprep.subr.mxu0 0.0
    %127 = vmatpush1.msra.mxu0 0.0
    %128 = vmatprep.subr.mxu0 0.0
    %129 = vmatpush1.msra.mxu0 0.0
    %130 = vmatprep.subr.mxu0 0.0
    %131 = vmatpush1.msra.mxu0 0.0
    %132 = vmatprep.subr.mxu0 0.0
    %133 = vmatpush1.msra.mxu0 0.0
    %134 = vmatprep.subr.mxu0 0.0
    %135 = vmatpush1.msra.mxu0 0.0
    %136 = vmatprep.subr.mxu0 0.0
    %137 = vmatpush1.msra.mxu0 0.0
    %138 = vmatprep.subr.mxu0 0.0
    %139 = vmatpush1.msra.mxu0 0.0
    %140 = vmatprep.subr.mxu0 0.0
    %141 = vmatpush1.msra.mxu0 0.0
    %142 = vmatprep.subr.mxu0 0.0
    %143 = vmatpush1.msra.mxu0 0.0
    %144 = vmatprep.subr.mxu0 0.0
    %145 = vmatpush1.msra.mxu0 0.0
    %146 = vmatprep.subr.mxu0 0.0
    %147 = vmatpush1.msra.mxu0 0.0
    %148 = vmatprep.subr.mxu0 0.0
    %149 = vmatpush1.msra.mxu0 0.0
    %150 = vmatprep.subr.mxu0 0.0
    %151 = vmatpush1.msra.mxu0 0.0
    %152 = vmatprep.subr.mxu0 0.0
    %153 = vmatpush1.msra.mxu0 0.0
    %154 = vmatprep.subr.mxu0 0.0
    %155 = vmatpush1.msra.mxu0 0.0
    %156 = vmatprep.subr.mxu0 0.0
    %157 = vmatpush1.msra.mxu0 0.0
    %158 = vmatprep.subr.mxu0 0.0
    %159 = vmatpush1.msra.mxu0 0.0
    %160 = vmatprep.subr.mxu0 0.0
    %161 = vmatpush1.msra.mxu0 0.0
    %162 = vmatprep.subr.mxu0 0.0
    %163 = vmatpush1.msra.mxu0 0.0
    %164 = vmatprep.subr.mxu0 0.0
    %165 = vmatpush1.msra.mxu0 0.0
    %166 = vmatprep.mubr.f32.mxu0 0.0
    %167 = vmatmul.mubr.f32.gmra.mrb[0].mxu0 %v79
    %v168 = vpop.f32.mrb[0].mxu0
    %v169 = vadd.f32 %v75, %v168
    %v170 = vpop.f32.mrb[0].mxu0
    %171 = vmatprep.mubr.f32.mxu0 0.0
    %172 = vmatmul.mubr.f32.gmra.mrb[0].mxu0 %v82
    %v173 = vpop.f32.mrb[0].mxu0
    %v174 = vadd.f32 %v75, %v173
    %v175 = vpop.f32.mrb[0].mxu0
    %176 = vmatprep.mubr.f32.mxu0 0.0
    %177 = vmatmul.mubr.f32.gmra.mrb[0].mxu0 %v85
    %v178 = vpop.f32.mrb[0].mxu0
    %v179 = vadd.f32 %v75, %v178
    %v180 = vpop.f32.mrb[0].mxu0
    %181 = vmatprep.mubr.f32.mxu0 0.0
    %182 = vmatmul.mubr.f32.gmra.mrb[0].mxu0 %v88
    %v183 = vpop.f32.mrb[0].mxu0
    %v184 = vadd.f32 %v75, %v183
    %v185 = vpop.f32.mrb[0].mxu0
    %186 = vmatprep.mubr.f32.mxu0 0.0
    %187 = vmatmul.mubr.f32.gmra.mrb[0].mxu0 %v91
    %v188 = vpop.f32.mrb[0].mxu0
    %v189 = vadd.f32 %v75, %v188
    %v190 = vpop.f32.mrb[0].mxu0
    %191 = vmatprep.mubr.f32.mxu0 0.0
    %192 = vmatmul.mubr.f32.gmra.mrb[0].mxu0 %v94
    %v193 = vpop.f32.mrb[0].mxu0
    %v194 = vadd.f32 %v75, %v193
    %v195 = vpop.f32.mrb[0].mxu0
    %196 = vmatprep.mubr.f32.mxu0 0.0
    %197 = vmatmul.mubr.f32.gmra.mrb[0].mxu0 %v97
    %v198 = vpop.f32.mrb[0].mxu0
    %v199 = vadd.f32 %v75, %v198
    %v200 = vpop.f32.mrb[0].mxu0
    %201 = vmatprep.mubr.f32.mxu0 0.0
    %202 = vmatmul.mubr.f32.gmra.mrb[0].mxu0 %v100
    %v203 = vpop.f32.mrb[0].mxu0
    %v204 = vadd.f32 %v75, %v203
    %v205 = vpop.f32.mrb[0].mxu0
    %206 = vdwg.mxu0
    %v207 = vxor.u32 %v169, 2147483648
    %v208 = vxor.u32 %v174, 2147483648
    %v209 = vxor.u32 %v179, 2147483648
    %v210 = vxor.u32 %v184, 2147483648
    %v211 = vxor.u32 %v189, 2147483648
    %v212 = vxor.u32 %v194, 2147483648
    %v213 = vxor.u32 %v199, 2147483648
    %v214 = vxor.u32 %v204, 2147483648
    %v215 = vmul.f32 %v207, 1.442695
    %v216 = vpow.pop %v215
    %v217 = vmul.f32 %v208, 1.442695
    %v218 = vpow.pop %v217
    %v219 = vmul.f32 %v209, 1.442695
    %v220 = vpow.pop %v219
    %v221 = vmul.f32 %v210, 1.442695
    %v222 = vpow.pop %v221
    %v223 = vmul.f32 %v211, 1.442695
    %v224 = vpow.pop %v223
    %v225 = vmul.f32 %v212, 1.442695
    %v226 = vpow.pop %v225
    %v227 = vmul.f32 %v213, 1.442695
    %v228 = vpow.pop %v227
    %v229 = vmul.f32 %v214, 1.442695
    %v230 = vpow.pop %v229
    %v231 = vadd.f32 %v216, 1.0
    %v232 = vadd.f32 %v218, 1.0
    %v233 = vadd.f32 %v220, 1.0
    %v234 = vadd.f32 %v222, 1.0
    %v235 = vadd.f32 %v224, 1.0
    %v236 = vadd.f32 %v226, 1.0
    %v237 = vadd.f32 %v228, 1.0
    %v238 = vadd.f32 %v230, 1.0
    %v239 = vrcp.pop %v231
    %v240 = vmul.f32 1.0, %v239
    %v241 = vrcp.pop %v232
    %v242 = vmul.f32 1.0, %v241
    %v243 = vrcp.pop %v233
    %v244 = vmul.f32 1.0, %v243
    %v245 = vrcp.pop %v234
    %v246 = vmul.f32 1.0, %v245
    %v247 = vrcp.pop %v235
    %v248 = vmul.f32 1.0, %v247
    %v249 = vrcp.pop %v236
    %v250 = vmul.f32 1.0, %v249
    %v251 = vrcp.pop %v237
    %v252 = vmul.f32 1.0, %v251
    %v253 = vrcp.pop %v238
    %v254 = vmul.f32 1.0, %v253
    %v255 = vmul.f32 %v169, %v240
    %v256 = vmul.f32 %v174, %v242
    %v257 = vmul.f32 %v179, %v244
    %v258 = vmul.f32 %v184, %v246
    %v259 = vmul.f32 %v189, %v248
    %v260 = vmul.f32 %v194, %v250
    %v261 = vmul.f32 %v199, %v252
    %v262 = vmul.f32 %v204, %v254
    %v263 = vld [vmem:[#allocation2] sm:$0xff]
    %v264 = vld [vmem:[#allocation2 + $0x8] sm:$0xff]
    %v265 = vld [vmem:[#allocation2 + $0x10] sm:$0xff]
    %v266 = vld [vmem:[#allocation2 + $0x18] sm:$0xff]
    %v267 = vld [vmem:[#allocation2 + $0x20] sm:$0xff]
    %v268 = vld [vmem:[#allocation2 + $0x28] sm:$0xff]
    %v269 = vld [vmem:[#allocation2 + $0x30] sm:$0xff]
    %v270 = vld [vmem:[#allocation2 + $0x38] sm:$0xff]
    %v271 = vld [vmem:[#allocation2 + $0x40] sm:$0xff]
    %v272 = vld [vmem:[#allocation2 + $0x48] sm:$0xff]
    %v273 = vld [vmem:[#allocation2 + $0x50] sm:$0xff]
    %v274 = vld [vmem:[#allocation2 + $0x58] sm:$0xff]
    %v275 = vld [vmem:[#allocation2 + $0x60] sm:$0xff]
    %v276 = vld [vmem:[#allocation2 + $0x68] sm:$0xff]
    %v277 = vld [vmem:[#allocation2 + $0x70] sm:$0xff]
    %v278 = vld [vmem:[#allocation2 + $0x78] sm:$0xff]
    %v279 = vld [vmem:[%s4] sm:$0x1]
    %v281 = vlaneseq
    %v282 = vshrl.u32 %v281, 7
    %v283 = vsub.s32 0, %v282
    %v284 = vrot.slane %v279, %v283
    %286 = vmatprep.subr.mxu0 0.0
    %287 = vmatpush1.msra.mxu0 %v263
    %288 = vmatprep.subr.mxu0 0.0
    %289 = vmatpush1.msra.mxu0 %v264
    %290 = vmatprep.subr.mxu0 0.0
    %291 = vmatpush1.msra.mxu0 %v265
    %292 = vmatprep.subr.mxu0 0.0
    %293 = vmatpush1.msra.mxu0 %v266
    %294 = vmatprep.subr.mxu0 0.0
    %295 = vmatpush1.msra.mxu0 %v267
    %296 = vmatprep.subr.mxu0 0.0
    %297 = vmatpush1.msra.mxu0 %v268
    %298 = vmatprep.subr.mxu0 0.0
    %299 = vmatpush1.msra.mxu0 %v269
    %300 = vmatprep.subr.mxu0 0.0
    %301 = vmatpush1.msra.mxu0 %v270
    %302 = vmatprep.subr.mxu0 0.0
    %303 = vmatpush1.msra.mxu0 %v271
    %304 = vmatprep.subr.mxu0 0.0
    %305 = vmatpush1.msra.mxu0 %v272
    %306 = vmatprep.subr.mxu0 0.0
    %307 = vmatpush1.msra.mxu0 %v273
    %308 = vmatprep.subr.mxu0 0.0
    %309 = vmatpush1.msra.mxu0 %v274
    %310 = vmatprep.subr.mxu0 0.0
    %311 = vmatpush1.msra.mxu0 %v275
    %312 = vmatprep.subr.mxu0 0.0
    %313 = vmatpush1.msra.mxu0 %v276
    %314 = vmatprep.subr.mxu0 0.0
    %315 = vmatpush1.msra.mxu0 %v277
    %316 = vmatprep.subr.mxu0 0.0
    %317 = vmatpush1.msra.mxu0 %v278
    %318 = vmatprep.subr.mxu0 0.0
    %319 = vmatpush1.msra.mxu0 0.0
    %320 = vmatprep.subr.mxu0 0.0
    %321 = vmatpush1.msra.mxu0 0.0
    %322 = vmatprep.subr.mxu0 0.0
    %323 = vmatpush1.msra.mxu0 0.0
    %324 = vmatprep.subr.mxu0 0.0
    %325 = vmatpush1.msra.mxu0 0.0
    %326 = vmatprep.subr.mxu0 0.0
    %327 = vmatpush1.msra.mxu0 0.0
    %328 = vmatprep.subr.mxu0 0.0
    %329 = vmatpush1.msra.mxu0 0.0
    %330 = vmatprep.subr.mxu0 0.0
    %331 = vmatpush1.msra.mxu0 0.0
    %332 = vmatprep.subr.mxu0 0.0
    %333 = vmatpush1.msra.mxu0 0.0
    %334 = vmatprep.subr.mxu0 0.0
    %335 = vmatpush1.msra.mxu0 0.0
    %336 = vmatprep.subr.mxu0 0.0
    %337 = vmatpush1.msra.mxu0 0.0
    %338 = vmatprep.subr.mxu0 0.0
    %339 = vmatpush1.msra.mxu0 0.0
    %340 = vmatprep.subr.mxu0 0.0
    %341 = vmatpush1.msra.mxu0 0.0
    %342 = vmatprep.subr.mxu0 0.0
    %343 = vmatpush1.msra.mxu0 0.0
    %344 = vmatprep.subr.mxu0 0.0
    %345 = vmatpush1.msra.mxu0 0.0
    %346 = vmatprep.subr.mxu0 0.0
    %347 = vmatpush1.msra.mxu0 0.0
    %348 = vmatprep.subr.mxu0 0.0
    %349 = vmatpush1.msra.mxu0 0.0
    %350 = vmatprep.mubr.f32.mxu0 0.0
    %351 = vmatmul.mubr.f32.gmra.mrb[0].mxu0 %v255
    %v352 = vpop.f32.mrb[0].mxu0
    %v353 = vadd.f32 %v284, %v352
    %v354 = vpop.f32.mrb[0].mxu0
    %355 = vmatprep.mubr.f32.mxu0 0.0
    %356 = vmatmul.mubr.f32.gmra.mrb[0].mxu0 %v256
    %v357 = vpop.f32.mrb[0].mxu0
    %v358 = vadd.f32 %v284, %v357
    %v359 = vpop.f32.mrb[0].mxu0
    %360 = vmatprep.mubr.f32.mxu0 0.0
    %361 = vmatmul.mubr.f32.gmra.mrb[0].mxu0 %v257
    %v362 = vpop.f32.mrb[0].mxu0
    %v363 = vadd.f32 %v284, %v362
    %v364 = vpop.f32.mrb[0].mxu0
    %365 = vmatprep.mubr.f32.mxu0 0.0
    %366 = vmatmul.mubr.f32.gmra.mrb[0].mxu0 %v258
    %v367 = vpop.f32.mrb[0].mxu0
    %v368 = vadd.f32 %v284, %v367
    %v369 = vpop.f32.mrb[0].mxu0
    %370 = vmatprep.mubr.f32.mxu0 0.0
    %371 = vmatmul.mubr.f32.gmra.mrb[0].mxu0 %v259
    %v372 = vpop.f32.mrb[0].mxu0
    %v373 = vadd.f32 %v284, %v372
    %v374 = vpop.f32.mrb[0].mxu0
    %375 = vmatprep.mubr.f32.mxu0 0.0
    %376 = vmatmul.mubr.f32.gmra.mrb[0].mxu0 %v260
    %v377 = vpop.f32.mrb[0].mxu0
    %v378 = vadd.f32 %v284, %v377
    %v379 = vpop.f32.mrb[0].mxu0
    %380 = vmatprep.mubr.f32.mxu0 0.0
    %381 = vmatmul.mubr.f32.gmra.mrb[0].mxu0 %v261
    %v382 = vpop.f32.mrb[0].mxu0
    %v383 = vadd.f32 %v284, %v382
    %v384 = vpop.f32.mrb[0].mxu0
    %385 = vmatprep.mubr.f32.mxu0 0.0
    %386 = vmatmul.mubr.f32.gmra.mrb[0].mxu0 %v262
    %v387 = vpop.f32.mrb[0].mxu0
    %v388 = vadd.f32 %v284, %v387
    %v389 = vpop.f32.mrb[0].mxu0
    %390 = vdwg.mxu0
    %v391 = vld [vmem:[#allocation5] sm:$0xff]
    %v392 = vld [vmem:[#allocation5 + $0x8] sm:$0xff]
    %v393 = vld [vmem:[#allocation5 + $0x10] sm:$0xff]
    %v394 = vld [vmem:[#allocation5 + $0x18] sm:$0xff]
    %v395 = vld [vmem:[#allocation5 + $0x20] sm:$0xff]
    %v396 = vld [vmem:[#allocation5 + $0x28] sm:$0xff]
    %v397 = vld [vmem:[#allocation5 + $0x30] sm:$0xff]
    %v398 = vld [vmem:[#allocation5 + $0x38] sm:$0xff]
    %v399 = vld [vmem:[#allocation5 + $0x40] sm:$0xff]
    %v400 = vld [vmem:[#allocation5 + $0x48] sm:$0xff]
    %v401 = vld [vmem:[#allocation5 + $0x50] sm:$0xff]
    %v402 = vld [vmem:[#allocation5 + $0x58] sm:$0xff]
    %v403 = vld [vmem:[#allocation5 + $0x60] sm:$0xff]
    %v404 = vld [vmem:[#allocation5 + $0x68] sm:$0xff]
    %v405 = vld [vmem:[#allocation5 + $0x70] sm:$0xff]
    %v406 = vld [vmem:[#allocation5 + $0x78] sm:$0xff]
    %407 = vmatprep.subr.mxu0 0.0
    %408 = vmatpush1.msra.mxu0 %v391
    %409 = vmatprep.subr.mxu0 0.0
    %410 = vmatpush1.msra.mxu0 %v392
    %411 = vmatprep.subr.mxu0 0.0
    %412 = vmatpush1.msra.mxu0 %v393
    %413 = vmatprep.subr.mxu0 0.0
    %414 = vmatpush1.msra.mxu0 %v394
    %415 = vmatprep.subr.mxu0 0.0
    %416 = vmatpush1.msra.mxu0 %v395
    %417 = vmatprep.subr.mxu0 0.0
    %418 = vmatpush1.msra.mxu0 %v396
    %419 = vmatprep.subr.mxu0 0.0
    %420 = vmatpush1.msra.mxu0 %v397
    %421 = vmatprep.subr.mxu0 0.0
    %422 = vmatpush1.msra.mxu0 %v398
    %423 = vmatprep.subr.mxu0 0.0
    %424 = vmatpush1.msra.mxu0 %v399
    %425 = vmatprep.subr.mxu0 0.0
    %426 = vmatpush1.msra.mxu0 %v400
    %427 = vmatprep.subr.mxu0 0.0
    %428 = vmatpush1.msra.mxu0 %v401
    %429 = vmatprep.subr.mxu0 0.0
    %430 = vmatpush1.msra.mxu0 %v402
    %431 = vmatprep.subr.mxu0 0.0
    %432 = vmatpush1.msra.mxu0 %v403
    %433 = vmatprep.subr.mxu0 0.0
    %434 = vmatpush1.msra.mxu0 %v404
    %435 = vmatprep.subr.mxu0 0.0
    %436 = vmatpush1.msra.mxu0 %v405
    %437 = vmatprep.subr.mxu0 0.0
    %438 = vmatpush1.msra.mxu0 %v406
    %439 = vmatprep.subr.mxu0 0.0
    %440 = vmatpush1.msra.mxu0 0.0
    %441 = vmatprep.subr.mxu0 0.0
    %442 = vmatpush1.msra.mxu0 0.0
    %443 = vmatprep.subr.mxu0 0.0
    %444 = vmatpush1.msra.mxu0 0.0
    %445 = vmatprep.subr.mxu0 0.0
    %446 = vmatpush1.msra.mxu0 0.0
    %447 = vmatprep.subr.mxu0 0.0
    %448 = vmatpush1.msra.mxu0 0.0
    %449 = vmatprep.subr.mxu0 0.0
    %450 = vmatpush1.msra.mxu0 0.0
    %451 = vmatprep.subr.mxu0 0.0
    %452 = vmatpush1.msra.mxu0 0.0
    %453 = vmatprep.subr.mxu0 0.0
    %454 = vmatpush1.msra.mxu0 0.0
    %455 = vmatprep.subr.mxu0 0.0
    %456 = vmatpush1.msra.mxu0 0.0
    %457 = vmatprep.subr.mxu0 0.0
    %458 = vmatpush1.msra.mxu0 0.0
    %459 = vmatprep.subr.mxu0 0.0
    %460 = vmatpush1.msra.mxu0 0.0
    %461 = vmatprep.subr.mxu0 0.0
    %462 = vmatpush1.msra.mxu0 0.0
    %463 = vmatprep.subr.mxu0 0.0
    %464 = vmatpush1.msra.mxu0 0.0
    %465 = vmatprep.subr.mxu0 0.0
    %466 = vmatpush1.msra.mxu0 0.0
    %467 = vmatprep.subr.mxu0 0.0
    %468 = vmatpush1.msra.mxu0 0.0
    %469 = vmatprep.subr.mxu0 0.0
    %470 = vmatpush1.msra.mxu0 0.0
    %471 = vmatprep.mubr.f32.mxu0 0.0
    %472 = vmatmul.mubr.f32.gmra.mrb[0].mxu0 %v353
    %v473 = vpop.f32.mrb[0].mxu0
    %v474 = vadd.f32 0.0, %v473
    %v475 = vpop.f32.mrb[0].mxu0
    %476 = vmatprep.mubr.f32.mxu0 0.0
    %477 = vmatmul.mubr.f32.gmra.mrb[0].mxu0 %v358
    %v478 = vpop.f32.mrb[0].mxu0
    %v479 = vadd.f32 0.0, %v478
    %v480 = vpop.f32.mrb[0].mxu0
    %481 = vmatprep.mubr.f32.mxu0 0.0
    %482 = vmatmul.mubr.f32.gmra.mrb[0].mxu0 %v363
    %v483 = vpop.f32.mrb[0].mxu0
    %v484 = vadd.f32 0.0, %v483
    %v485 = vpop.f32.mrb[0].mxu0
    %486 = vmatprep.mubr.f32.mxu0 0.0
    %487 = vmatmul.mubr.f32.gmra.mrb[0].mxu0 %v368
    %v488 = vpop.f32.mrb[0].mxu0
    %v489 = vadd.f32 0.0, %v488
    %v490 = vpop.f32.mrb[0].mxu0
    %491 = vmatprep.mubr.f32.mxu0 0.0
    %492 = vmatmul.mubr.f32.gmra.mrb[0].mxu0 %v373
    %v493 = vpop.f32.mrb[0].mxu0
    %v494 = vadd.f32 0.0, %v493
    %v495 = vpop.f32.mrb[0].mxu0
    %496 = vmatprep.mubr.f32.mxu0 0.0
    %497 = vmatmul.mubr.f32.gmra.mrb[0].mxu0 %v378
    %v498 = vpop.f32.mrb[0].mxu0
    %v499 = vadd.f32 0.0, %v498
    %v500 = vpop.f32.mrb[0].mxu0
    %501 = vmatprep.mubr.f32.mxu0 0.0
    %502 = vmatmul.mubr.f32.gmra.mrb[0].mxu0 %v383
    %v503 = vpop.f32.mrb[0].mxu0
    %v504 = vadd.f32 0.0, %v503
    %v505 = vpop.f32.mrb[0].mxu0
    %506 = vmatprep.mubr.f32.mxu0 0.0
    %507 = vmatmul.mubr.f32.gmra.mrb[0].mxu0 %v388
    %v508 = vpop.f32.mrb[0].mxu0
    %v509 = vadd.f32 0.0, %v508
    %v510 = vpop.f32.mrb[0].mxu0
    %511 = vdwg.mxu0
    %v512 = vsub.f32 %v353, %v474
    %v513 = vsub.f32 %v358, %v479
    %v514 = vsub.f32 %v363, %v484
    %v515 = vsub.f32 %v368, %v489
    %v516 = vsub.f32 %v373, %v494
    %v517 = vsub.f32 %v378, %v499
    %v518 = vsub.f32 %v383, %v504
    %v519 = vsub.f32 %v388, %v509
    %v520 = vmul.f32 %v512, %v512
    %v521 = vmul.f32 %v513, %v513
    %v522 = vmul.f32 %v514, %v514
    %v523 = vmul.f32 %v515, %v515
    %v524 = vmul.f32 %v516, %v516
    %v525 = vmul.f32 %v517, %v517
    %v526 = vmul.f32 %v518, %v518
    %v527 = vmul.f32 %v519, %v519
    %528 = vmatprep.subr.mxu0 0.0
    %529 = vmatpush1.msra.mxu0 %v391
    %530 = vmatprep.subr.mxu0 0.0
    %531 = vmatpush1.msra.mxu0 %v392
    %532 = vmatprep.subr.mxu0 0.0
    %533 = vmatpush1.msra.mxu0 %v393
    %534 = vmatprep.subr.mxu0 0.0
    %535 = vmatpush1.msra.mxu0 %v394
    %536 = vmatprep.subr.mxu0 0.0
    %537 = vmatpush1.msra.mxu0 %v395
    %538 = vmatprep.subr.mxu0 0.0
    %539 = vmatpush1.msra.mxu0 %v396
    %540 = vmatprep.subr.mxu0 0.0
    %541 = vmatpush1.msra.mxu0 %v397
    %542 = vmatprep.subr.mxu0 0.0
    %543 = vmatpush1.msra.mxu0 %v398
    %544 = vmatprep.subr.mxu0 0.0
    %545 = vmatpush1.msra.mxu0 %v399
    %546 = vmatprep.subr.mxu0 0.0
    %547 = vmatpush1.msra.mxu0 %v400
    %548 = vmatprep.subr.mxu0 0.0
    %549 = vmatpush1.msra.mxu0 %v401
    %550 = vmatprep.subr.mxu0 0.0
    %551 = vmatpush1.msra.mxu0 %v402
    %552 = vmatprep.subr.mxu0 0.0
    %553 = vmatpush1.msra.mxu0 %v403
    %554 = vmatprep.subr.mxu0 0.0
    %555 = vmatpush1.msra.mxu0 %v404
    %556 = vmatprep.subr.mxu0 0.0
    %557 = vmatpush1.msra.mxu0 %v405
    %558 = vmatprep.subr.mxu0 0.0
    %559 = vmatpush1.msra.mxu0 %v406
    %560 = vmatprep.subr.mxu0 0.0
    %561 = vmatpush1.msra.mxu0 0.0
    %562 = vmatprep.subr.mxu0 0.0
    %563 = vmatpush1.msra.mxu0 0.0
    %564 = vmatprep.subr.mxu0 0.0
    %565 = vmatpush1.msra.mxu0 0.0
    %566 = vmatprep.subr.mxu0 0.0
    %567 = vmatpush1.msra.mxu0 0.0
    %568 = vmatprep.subr.mxu0 0.0
    %569 = vmatpush1.msra.mxu0 0.0
    %570 = vmatprep.subr.mxu0 0.0
    %571 = vmatpush1.msra.mxu0 0.0
    %572 = vmatprep.subr.mxu0 0.0
    %573 = vmatpush1.msra.mxu0 0.0
    %574 = vmatprep.subr.mxu0 0.0
    %575 = vmatpush1.msra.mxu0 0.0
    %576 = vmatprep.subr.mxu0 0.0
    %577 = vmatpush1.msra.mxu0 0.0
    %578 = vmatprep.subr.mxu0 0.0
    %579 = vmatpush1.msra.mxu0 0.0
    %580 = vmatprep.subr.mxu0 0.0
    %581 = vmatpush1.msra.mxu0 0.0
    %582 = vmatprep.subr.mxu0 0.0
    %583 = vmatpush1.msra.mxu0 0.0
    %584 = vmatprep.subr.mxu0 0.0
    %585 = vmatpush1.msra.mxu0 0.0
    %586 = vmatprep.subr.mxu0 0.0
    %587 = vmatpush1.msra.mxu0 0.0
    %588 = vmatprep.subr.mxu0 0.0
    %589 = vmatpush1.msra.mxu0 0.0
    %590 = vmatprep.subr.mxu0 0.0
    %591 = vmatpush1.msra.mxu0 0.0
    %592 = vmatprep.mubr.f32.mxu0 0.0
    %593 = vmatmul.mubr.f32.gmra.mrb[0].mxu0 %v520
    %v594 = vpop.f32.mrb[0].mxu0
    %v595 = vadd.f32 1e-05, %v594
    %v596 = vpop.f32.mrb[0].mxu0
    %597 = vmatprep.mubr.f32.mxu0 0.0
    %598 = vmatmul.mubr.f32.gmra.mrb[0].mxu0 %v521
    %v599 = vpop.f32.mrb[0].mxu0
    %v600 = vadd.f32 1e-05, %v599
    %v601 = vpop.f32.mrb[0].mxu0
    %602 = vmatprep.mubr.f32.mxu0 0.0
    %603 = vmatmul.mubr.f32.gmra.mrb[0].mxu0 %v522
    %v604 = vpop.f32.mrb[0].mxu0
    %v605 = vadd.f32 1e-05, %v604
    %v606 = vpop.f32.mrb[0].mxu0
    %607 = vmatprep.mubr.f32.mxu0 0.0
    %608 = vmatmul.mubr.f32.gmra.mrb[0].mxu0 %v523
    %v609 = vpop.f32.mrb[0].mxu0
    %v610 = vadd.f32 1e-05, %v609
    %v611 = vpop.f32.mrb[0].mxu0
    %612 = vmatprep.mubr.f32.mxu0 0.0
    %613 = vmatmul.mubr.f32.gmra.mrb[0].mxu0 %v524
    %v614 = vpop.f32.mrb[0].mxu0
    %v615 = vadd.f32 1e-05, %v614
    %v616 = vpop.f32.mrb[0].mxu0
    %617 = vmatprep.mubr.f32.mxu0 0.0
    %618 = vmatmul.mubr.f32.gmra.mrb[0].mxu0 %v525
    %v619 = vpop.f32.mrb[0].mxu0
    %v620 = vadd.f32 1e-05, %v619
    %v621 = vpop.f32.mrb[0].mxu0
    %622 = vmatprep.mubr.f32.mxu0 0.0
    %623 = vmatmul.mubr.f32.gmra.mrb[0].mxu0 %v526
    %v624 = vpop.f32.mrb[0].mxu0
    %v625 = vadd.f32 1e-05, %v624
    %v626 = vpop.f32.mrb[0].mxu0
    %627 = vmatprep.mubr.f32.mxu0 0.0
    %628 = vmatmul.mubr.f32.gmra.mrb[0].mxu0 %v527
    %v629 = vpop.f32.mrb[0].mxu0
    %v630 = vadd.f32 1e-05, %v629
    %v631 = vpop.f32.mrb[0].mxu0
    %632 = vdwg.mxu0
    %v633 = vrsqrt.pop %v595
    %v634 = vrsqrt.pop %v600
    %v635 = vrsqrt.pop %v605
    %v636 = vrsqrt.pop %v610
    %v637 = vrsqrt.pop %v615
    %v638 = vrsqrt.pop %v620
    %v639 = vrsqrt.pop %v625
    %v640 = vrsqrt.pop %v630
    %v641 = vmul.f32 %v512, %v633
    %v642 = vmul.f32 %v513, %v634
    %v643 = vmul.f32 %v514, %v635
    %v644 = vmul.f32 %v515, %v636
    %v645 = vmul.f32 %v516, %v637
    %v646 = vmul.f32 %v517, %v638
    %v647 = vmul.f32 %v518, %v639
    %v648 = vmul.f32 %v519, %v640
    %v649 = vld [vmem:[%s6] sm:$0x1]
    %v651 = vlaneseq
    %v652 = vshrl.u32 %v651, 7
    %v653 = vsub.s32 0, %v652
    %v654 = vrot.slane %v649, %v653
    %v656 = vmul.f32 %v641, %v654
    %v657 = vmul.f32 %v642, %v654
    %v658 = vmul.f32 %v643, %v654
    %v659 = vmul.f32 %v644, %v654
    %v660 = vmul.f32 %v645, %v654
    %v661 = vmul.f32 %v646, %v654
    %v662 = vmul.f32 %v647, %v654
    %v663 = vmul.f32 %v648, %v654
    %v664 = vld [vmem:[%s7] sm:$0x1]
    %v666 = vlaneseq
    %v667 = vshrl.u32 %v666, 7
    %v668 = vsub.s32 0, %v667
    %v669 = vrot.slane %v664, %v668
    %v671 = vadd.f32 %v656, %v669
    %v672 = vadd.f32 %v657, %v669
    %v673 = vadd.f32 %v658, %v669
    %v674 = vadd.f32 %v659, %v669
    %v675 = vadd.f32 %v660, %v669
    %v676 = vadd.f32 %v661, %v669
    %v677 = vadd.f32 %v662, %v669
    %v678 = vadd.f32 %v663, %v669
    %679 = vst [vmem:[#allocation7] sm:$0xff] %v671
    %680 = vst [vmem:[#allocation7 + $0x8] sm:$0xff] %v672
    %681 = vst [vmem:[#allocation7 + $0x10] sm:$0xff] %v673
    %682 = vst [vmem:[#allocation7 + $0x18] sm:$0xff] %v674
    %683 = vst [vmem:[#allocation7 + $0x20] sm:$0xff] %v675
    %684 = vst [vmem:[#allocation7 + $0x28] sm:$0xff] %v676
    %685 = vst [vmem:[#allocation7 + $0x30] sm:$0xff] %v677
    %686 = vst [vmem:[#allocation7 + $0x38] sm:$0xff] %v678
    // Predicated region
    $region42: #{tpu_custom_call.1} parent=1 // pred_check
      _
    $region43: #{tpu_custom_call.1} parent=1 // pred_check_branch
      %688 = sbr.rel (0) target = $region45
    $region44: #{tpu_custom_call.1} parent=1 // pred_region
      %s690 = ssub.s32 1024, 1024
      %691 = vsyncadd [#allocation4], %s690
      %s692 = sshll.u32 [#allocation7], 4
      %s693 = int_to_ptr.vmem [resolvable:$true] %s692
      %698 = dma.vmem_to_hbm [thread:$0]  %s693, 1024, %s8, [#allocation4], 128, 128, 8
    $region45: #{tpu_custom_call.1} parent=1 // pred_fallthru
      _
    // Predicated region
    $region46: #{tpu_custom_call.1} parent=1 // pred_check
      _
    $region47: #{tpu_custom_call.1} parent=1 // pred_check_branch
      %700 = sbr.rel (0) target = $region49
    $region48: #{tpu_custom_call.1} parent=1 // pred_region
      %701 = dma.done [#allocation4], 1024
    $region49: #{tpu_custom_call.1} parent=1 // pred_fallthru
      _
    %702 = vsyncpa [#allocation3], 1
    %703 = vsyncpa [#allocation6], 1
    %704 = vsyncpa [#allocation4], 1

</llo_original>
